<compile_context>
chip_gen: v6e
topology: v6e:2x2x1
jax: 0.10.0
libtpu: 0.0.40
codegen_flags: <defaults>
</compile_context>

<pallas_src>
import functools
import math

import jax
import jax.numpy as jnp
from jax.experimental import pallas as pl
from jax.experimental.pallas import tpu as pltpu


_TILE_VMEM_BUDGET = 20 * 1024 * 1024   # budget used when choosing tile sizes
_VMEM_LIMIT = 32 * 1024 * 1024         # scoped-VMEM cap that is safe on v5e/v6e/v7x


def _conv1d_lrelu_kernel(x_ref, w_ref, b_ref, o_ref, acc_ref, *, nq, tl, alpha):
    """One grid step of the q-folded conv GEMM.

    x_ref:   (tci*stride, tl + q_max)   phase-split input window, row = ci*stride + p
    w_ref:   (nq, tco, tci*stride)      q-folded weights,          col = ci*stride + p
    b_ref:   (tco, 1)  f32              bias
    o_ref:   (tco, tl) f32              output tile (lane dim = L_out)
    acc_ref: (tco, tl) f32              accumulator, resident across the C_in chunks
    """
    c = pl.program_id(3)

    # Init: fold the bias straight into the accumulator (no epilogue add).
    @pl.when(c == 0)
    def _init():
        acc_ref[...] = jnp.zeros_like(acc_ref) + b_ref[...]

    # nq = ceil(K/stride) accumulated GEMMs.  All stride taps sharing the same
    # q are folded into one dot with a (tci*stride)-deep contraction; the x
    # slice start q is a static Python int, so no dynamic/unaligned indexing.
    for q in range(nq):
        xs = x_ref[:, q:q + tl]                              # (tci*stride, tl)
        acc_ref[...] += jnp.dot(w_ref[q], xs,
                                preferred_element_type=jnp.float32)

    # Epilogue: fused LeakyReLU + store, only on the last C_in chunk.
    @pl.when(c == pl.num_programs(3) - 1)
    def _epilogue():
        y = acc_ref[...]
        o_ref[...] = jnp.where(y >= 0, y, alpha * y).astype(o_ref.dtype)


def _select_tiles(C_in, C_out, L_out, nq, stride, q_max, op_itemsize):
    """Pick (tl, tco, tci) so the double-buffered blocks fit the VMEM budget."""
    # Lane tile over L_out: one big lane-dense tile whenever possible.
    if L_out <= 1024:
        tl = L_out
    elif L_out % 1024 == 0:
        tl = 1024
    else:
        tl = 512
    n_l = -(-L_out // tl)
    L_out_p = n_l * tl
    tl_ext = tl + q_max

    def vmem_bytes(tco, tci):
        w = nq * tco * tci * stride * op_itemsize * 2   # weight block, dbl-buffered
        xb = tci * stride * tl_ext * op_itemsize * 2    # x block, dbl-buffered
        ob = tco * tl * 4 * 2                           # f32 output block
        bb = tco * 128 * 4 * 2                          # bias block (lane-padded)
        acc = tco * tl * 4                              # f32 accumulator scratch
        return w + xb + ob + bb + acc

    def halving_candidates(full, floor, ok):
        cands, t = [full], full
        while t % 2 == 0 and t > floor:
            t //= 2
            if full % t == 0 and ok(t):
                cands.append(t)
        return cands

    # Prefer tci = C_in (n_ci == 1 -> weight fetched once, deepest contraction);
    # only then shrink tco; chunk C_in only as a last resort.
    tci_cands = halving_candidates(C_in, 32, lambda t: (t * stride) % 128 == 0)
    tco_cands = halving_candidates(C_out, 128, lambda t: t % 8 == 0)
    for tci in tci_cands:
        for tco in tco_cands:
            if vmem_bytes(tco, tci) <= _TILE_VMEM_BUDGET:
                return tl, n_l, L_out_p, tl_ext, tco, tci
    return tl, n_l, L_out_p, tl_ext, tco_cands[-1], tci_cands[-1]


def conv1d_block_forward(x, weight, bias, *, stride=4, padding=11, alpha=0.2,
                         mxu_dtype=jnp.bfloat16):
    """Forward pass of the Conv1D block.

    Args:
      x:      (B, C_in, L)      float32, PyTorch NCL layout.
      weight: (C_out, C_in, K)  float32 (PyTorch Conv1d weight layout).
      bias:   (C_out,)          float32.
      mxu_dtype: dtype of the MXU operands.  bf16 (default) halves operand DMA
        bytes with ~1e-3 relative error; pass jnp.float32 for exact PyTorch
        f32 conv semantics.
    Returns:
      (B, C_out, L_out) float32 with L_out = (L + 2*padding - K)//stride + 1.
    """
    B, C_in, L = x.shape
    C_out, _, K = weight.shape
    L_out = (L + 2 * padding - K) // stride + 1
    nq = -(-K // stride)          # ceil(K / stride)
    q_max = nq - 1
    R = C_in * stride

    tl, n_l, L_out_p, tl_ext, tco, tci = _select_tiles(
        C_in, C_out, L_out, nq, stride, q_max, jnp.dtype(mxu_dtype).itemsize)
    n_co = C_out // tco
    n_ci = C_in // tci

    # ---- cheap host-side layout prep (no K-fold im2col expansion) ----------
    M = L_out_p + q_max
    target = M * stride
    assert target >= (L_out - 1) * stride + K, "padded length too small"
    pad_r = target - (L + padding)
    x_c = x.astype(mxu_dtype)
    x_p = jnp.pad(x_c, ((0, 0), (0, 0), (padding, max(pad_r, 0))))[:, :, :target]
    # Phase split: x_flat[b, ci*stride + p, m] = x_pad[b, ci, m*stride + p]
    x_flat = x_p.reshape(B, C_in, M, stride)
    x_flat = jnp.transpose(x_flat, (0, 1, 3, 2)).reshape(B, R, M)
    # Pre-tile along L_out with a q_max halo so the x BlockSpec depends on the
    # L-tile index j and each byte is DMA'd once (duplication is q_max/tl ~ 1%).
    if n_l == 1:
        x_t = x_flat[:, None]                                   # (B, 1, R, tl_ext)
    else:
        x_t = jnp.stack([x_flat[:, :, j * tl: j * tl + tl_ext]
                         for j in range(n_l)], axis=1)          # (B, n_l, R, tl_ext)

    # q-folded weights: pad K up to nq*stride, column index = ci*stride + p.
    w_p = jnp.pad(weight, ((0, 0), (0, 0), (0, nq * stride - K)))
    w_q = w_p.reshape(C_out, C_in, nq, stride)
    w_q = jnp.transpose(w_q, (2, 0, 1, 3)).reshape(nq, C_out, R).astype(mxu_dtype)
    b_t = bias.astype(jnp.float32).reshape(C_out, 1)

    kernel = functools.partial(_conv1d_lrelu_kernel, nq=nq, tl=tl, alpha=alpha)

    out = pl.pallas_call(
        kernel,
        out_shape=jax.ShapeDtypeStruct((B, C_out, L_out_p), x.dtype),
        grid_spec=pltpu.PrefetchScalarGridSpec(
            num_scalar_prefetch=0,
            # C_out tiles outermost, C_in reduction innermost: with n_ci == 1
            # (the common case) the weight block index only changes at C_out
            # boundaries, so the whole weight is streamed from HBM exactly once.
            grid=(n_co, B, n_l, n_ci),
            in_specs=[
                # phase-split x: one (L-tile + halo) window per (b, j, c).
                pl.BlockSpec((None, None, tci * stride, tl_ext),
                             lambda co, b, j, c: (b, j, c, 0)),
                # q-folded weights: resident across (b, j) when n_ci == 1.
                pl.BlockSpec((nq, tco, tci * stride),
                             lambda co, b, j, c: (0, co, c)),
                # bias: per-C_out-tile block.
                pl.BlockSpec((tco, 1), lambda co, b, j, c: (co, 0)),
            ],
            out_specs=pl.BlockSpec((None, tco, tl),
                                   lambda co, b, j, c: (b, co, j)),
            scratch_shapes=[pltpu.VMEM((tco, tl), jnp.float32)],
        ),
        compiler_params=pltpu.CompilerParams(
            dimension_semantics=("parallel", "parallel", "parallel", "arbitrary"),
            vmem_limit_bytes=_VMEM_LIMIT,
        ),
    )(x_t, w_q, b_t)

    # Output is already NCL; drop L_out padding columns only if any were added.
    if L_out_p != L_out:
        out = out[:, :, :L_out]
    return out


def _reference_forward(x, weight, bias, *, stride, padding, alpha):
    """Pure-JAX reference (lax conv) for a sanity check."""
    y = jax.lax.conv_general_dilated(
        x, weight,
        window_strides=(stride,),
        padding=[(padding, padding)],
        dimension_numbers=("NCH", "OIH", "NCH"),
    )
    y = y + bias[None, :, None]
    return jnp.where(y >= 0, y, alpha * y)


if __name__ == "__main__":
    # Small, Conv1D-consistent shapes: batch=2, in_channels=4, out_channels=8,
    # sequence length=64, kernel_size=25 (WaveGAN-style), stride=4, padding=11.
    B, C_in, C_out, L, K = 2, 4, 8, 64, 25
    stride, padding, alpha = 4, 11, 0.2

    key = jax.random.PRNGKey(0)
    kx, kw, kb = jax.random.split(key, 3)

    x = jax.random.normal(kx, (B, C_in, L), dtype=jnp.float32)

    # Deterministic parameter init mimicking nn.Conv1d default:
    # U(-sqrt(1/(C_in*K)), sqrt(1/(C_in*K)))
    bound = 1.0 / math.sqrt(C_in * K)
    weight = jax.random.uniform(kw, (C_out, C_in, K), jnp.float32, -bound, bound)
    bias = jax.random.uniform(kb, (C_out,), jnp.float32, -bound, bound)

    out = conv1d_block_forward(x, weight, bias, stride=stride, padding=padding,
                               alpha=alpha, mxu_dtype=jnp.bfloat16)
    out = jax.block_until_ready(out)

    # Tight check vs. a reference fed the same bf16-rounded operands
    # (isolates accumulation-order error only).
    x_bf = x.astype(jnp.bfloat16).astype(jnp.float32)
    w_bf = weight.astype(jnp.bfloat16).astype(jnp.float32)
    ref_bf = _reference_forward(x_bf, w_bf, bias,
                                stride=stride, padding=padding, alpha=alpha)
    # Loose check vs. the full-f32 module semantics (bf16 MXU inputs).
    ref_f32 = _reference_forward(x, weight, bias,
                                 stride=stride, padding=padding, alpha=alpha)

    assert out.shape == ref_f32.shape, (out.shape, ref_f32.shape)
    assert jnp.allclose(out, ref_bf, atol=1e-4, rtol=1e-3), "mismatch vs bf16-rounded reference"
    assert jnp.allclose(out, ref_f32, atol=2e-2, rtol=2e-2), "mismatch vs f32 reference"

    print("KERNEL_OK")
</pallas_src>

<mosaic_0001>
module attributes {stable_mosaic.version = 11 : i64} {
  func.func @_conv1d_lrelu_kernel(%arg0: i32, %arg1: i32, %arg2: i32, %arg3: i32, %arg4: memref<1x1x16x22xbf16, #tpu.memory_space<vmem>>, %arg5: memref<7x8x16xbf16, #tpu.memory_space<vmem>>, %arg6: memref<8x1xf32, #tpu.memory_space<vmem>>, %arg7: memref<1x8x16xf32, #tpu.memory_space<vmem>>, %arg8: memref<8x16xf32, #tpu.memory_space<vmem>>) attributes {dimension_semantics = [#tpu.dimension_semantics<parallel>, #tpu.dimension_semantics<parallel>, #tpu.dimension_semantics<parallel>, #tpu.dimension_semantics<arbitrary>], iteration_bounds = array<i64: 1, 2, 1, 1>, scalar_prefetch = 0 : i64, scratch_operands = 1 : i64, tpu.core_type = #tpu.core_type<tc>, window_params = [{transform_indices = @transform_0, window_bounds = array<i64: 1, 1, 16, 22>}, {transform_indices = @transform_1, window_bounds = array<i64: 7, 8, 16>}, {transform_indices = @transform_2, window_bounds = array<i64: 8, 1>}, {transform_indices = @transform_3, window_bounds = array<i64: 1, 8, 16>}]} {
    %c0_i32 = arith.constant 0 : i32
    %0 = arith.cmpi eq, %arg3, %c0_i32 : i32
    %1 = arith.extui %0 : i1 to i32
    %c0_i32_0 = arith.constant 0 : i32
    %2 = arith.cmpi ne, %1, %c0_i32_0 : i32
    scf.if %2 {
      %cst_79 = arith.constant 0.000000e+00 : f32
      %62 = vector.broadcast %cst_79 : f32 to vector<8x16xf32>
      %c0_80 = arith.constant 0 : index
      %c0_81 = arith.constant 0 : index
      %63 = vector.load %arg6[%c0_80, %c0_81] : memref<8x1xf32, #tpu.memory_space<vmem>>, vector<8x1xf32>
      %64 = vector.broadcast %63 : vector<8x1xf32> to vector<8x16xf32>
      %65 = arith.addf %62, %64 : vector<8x16xf32>
      %c0_82 = arith.constant 0 : index
      %c0_83 = arith.constant 0 : index
      %66 = vector.load %arg8[%c0_82, %c0_83] : memref<8x16xf32, #tpu.memory_space<vmem>>, vector<8x16xf32>
      tpu.vector_store %arg8[%c0_82, %c0_83], %65 {strides = array<i32>} : memref<8x16xf32, #tpu.memory_space<vmem>>, vector<8x16xf32>,
    } else {
    }
    %c0 = arith.constant 0 : index
    %c0_1 = arith.constant 0 : index
    %c0_2 = arith.constant 0 : index
    %c0_3 = arith.constant 0 : index
    %3 = vector.load %arg4[%c0, %c0_1, %c0_2, %c0_3] : memref<1x1x16x22xbf16, #tpu.memory_space<vmem>>, vector<1x1x16x16xbf16>
    %4 = vector.shape_cast %3 : vector<1x1x16x16xbf16> to vector<16x16xbf16>
    %c0_4 = arith.constant 0 : index
    %c0_5 = arith.constant 0 : index
    %5 = vector.load %arg8[%c0_4, %c0_5] : memref<8x16xf32, #tpu.memory_space<vmem>>, vector<8x16xf32>
    %c0_6 = arith.constant 0 : index
    %c0_7 = arith.constant 0 : index
    %c0_8 = arith.constant 0 : index
    %6 = vector.load %arg5[%c0_6, %c0_7, %c0_8] : memref<7x8x16xbf16, #tpu.memory_space<vmem>>, vector<1x8x16xbf16>
    %7 = vector.shape_cast %6 : vector<1x8x16xbf16> to vector<8x16xbf16>
    %cst = arith.constant dense<0.000000e+00> : vector<8x16xf32>
    %8 = tpu.matmul %7, %4, %cst {dimension_numbers = #tpu.dot_dimension_numbers<[1], [0], [0], [1], [0, 0, 1, 1], [], []>} : vector<8x16xbf16>, vector<16x16xbf16>, vector<8x16xf32> -> vector<8x16xf32>
    %9 = arith.addf %5, %8 : vector<8x16xf32>
    %c0_9 = arith.constant 0 : index
    %c0_10 = arith.constant 0 : index
    %10 = vector.load %arg8[%c0_9, %c0_10] : memref<8x16xf32, #tpu.memory_space<vmem>>, vector<8x16xf32>
    tpu.vector_store %arg8[%c0_9, %c0_10], %9 {strides = array<i32>} : memref<8x16xf32, #tpu.memory_space<vmem>>, vector<8x16xf32>,
    %c0_11 = arith.constant 0 : index
    %c0_12 = arith.constant 0 : index
    %c0_13 = arith.constant 0 : index
    %c1 = arith.constant 1 : index
    %11 = vector.load %arg4[%c0_11, %c0_12, %c0_13, %c1] : memref<1x1x16x22xbf16, #tpu.memory_space<vmem>>, vector<1x1x16x16xbf16>
    %12 = vector.shape_cast %11 : vector<1x1x16x16xbf16> to vector<16x16xbf16>
    %c0_14 = arith.constant 0 : index
    %c0_15 = arith.constant 0 : index
    %13 = vector.load %arg8[%c0_14, %c0_15] : memref<8x16xf32, #tpu.memory_space<vmem>>, vector<8x16xf32>
    %c1_16 = arith.constant 1 : index
    %c0_17 = arith.constant 0 : index
    %c0_18 = arith.constant 0 : index
    %14 = vector.load %arg5[%c1_16, %c0_17, %c0_18] : memref<7x8x16xbf16, #tpu.memory_space<vmem>>, vector<1x8x16xbf16>
    %15 = vector.shape_cast %14 : vector<1x8x16xbf16> to vector<8x16xbf16>
    %cst_19 = arith.constant dense<0.000000e+00> : vector<8x16xf32>
    %16 = tpu.matmul %15, %12, %cst_19 {dimension_numbers = #tpu.dot_dimension_numbers<[1], [0], [0], [1], [0, 0, 1, 1], [], []>} : vector<8x16xbf16>, vector<16x16xbf16>, vector<8x16xf32> -> vector<8x16xf32>
    %17 = arith.addf %13, %16 : vector<8x16xf32>
    %c0_20 = arith.constant 0 : index
    %c0_21 = arith.constant 0 : index
    %18 = vector.load %arg8[%c0_20, %c0_21] : memref<8x16xf32, #tpu.memory_space<vmem>>, vector<8x16xf32>
    tpu.vector_store %arg8[%c0_20, %c0_21], %17 {strides = array<i32>} : memref<8x16xf32, #tpu.memory_space<vmem>>, vector<8x16xf32>,
    %c0_22 = arith.constant 0 : index
    %c0_23 = arith.constant 0 : index
    %c0_24 = arith.constant 0 : index
    %c2 = arith.constant 2 : index
    %19 = vector.load %arg4[%c0_22, %c0_23, %c0_24, %c2] : memref<1x1x16x22xbf16, #tpu.memory_space<vmem>>, vector<1x1x16x16xbf16>
    %20 = vector.shape_cast %19 : vector<1x1x16x16xbf16> to vector<16x16xbf16>
    %c0_25 = arith.constant 0 : index
    %c0_26 = arith.constant 0 : index
    %21 = vector.load %arg8[%c0_25, %c0_26] : memref<8x16xf32, #tpu.memory_space<vmem>>, vector<8x16xf32>
    %c2_27 = arith.constant 2 : index
    %c0_28 = arith.constant 0 : index
    %c0_29 = arith.constant 0 : index
    %22 = vector.load %arg5[%c2_27, %c0_28, %c0_29] : memref<7x8x16xbf16, #tpu.memory_space<vmem>>, vector<1x8x16xbf16>
    %23 = vector.shape_cast %22 : vector<1x8x16xbf16> to vector<8x16xbf16>
    %cst_30 = arith.constant dense<0.000000e+00> : vector<8x16xf32>
    %24 = tpu.matmul %23, %20, %cst_30 {dimension_numbers = #tpu.dot_dimension_numbers<[1], [0], [0], [1], [0, 0, 1, 1], [], []>} : vector<8x16xbf16>, vector<16x16xbf16>, vector<8x16xf32> -> vector<8x16xf32>
    %25 = arith.addf %21, %24 : vector<8x16xf32>
    %c0_31 = arith.constant 0 : index
    %c0_32 = arith.constant 0 : index
    %26 = vector.load %arg8[%c0_31, %c0_32] : memref<8x16xf32, #tpu.memory_space<vmem>>, vector<8x16xf32>
    tpu.vector_store %arg8[%c0_31, %c0_32], %25 {strides = array<i32>} : memref<8x16xf32, #tpu.memory_space<vmem>>, vector<8x16xf32>,
    %c0_33 = arith.constant 0 : index
    %c0_34 = arith.constant 0 : index
    %c0_35 = arith.constant 0 : index
    %c3 = arith.constant 3 : index
    %27 = vector.load %arg4[%c0_33, %c0_34, %c0_35, %c3] : memref<1x1x16x22xbf16, #tpu.memory_space<vmem>>, vector<1x1x16x16xbf16>
    %28 = vector.shape_cast %27 : vector<1x1x16x16xbf16> to vector<16x16xbf16>
    %c0_36 = arith.constant 0 : index
    %c0_37 = arith.constant 0 : index
    %29 = vector.load %arg8[%c0_36, %c0_37] : memref<8x16xf32, #tpu.memory_space<vmem>>, vector<8x16xf32>
    %c3_38 = arith.constant 3 : index
    %c0_39 = arith.constant 0 : index
    %c0_40 = arith.constant 0 : index
    %30 = vector.load %arg5[%c3_38, %c0_39, %c0_40] : memref<7x8x16xbf16, #tpu.memory_space<vmem>>, vector<1x8x16xbf16>
    %31 = vector.shape_cast %30 : vector<1x8x16xbf16> to vector<8x16xbf16>
    %cst_41 = arith.constant dense<0.000000e+00> : vector<8x16xf32>
    %32 = tpu.matmul %31, %28, %cst_41 {dimension_numbers = #tpu.dot_dimension_numbers<[1], [0], [0], [1], [0, 0, 1, 1], [], []>} : vector<8x16xbf16>, vector<16x16xbf16>, vector<8x16xf32> -> vector<8x16xf32>
    %33 = arith.addf %29, %32 : vector<8x16xf32>
    %c0_42 = arith.constant 0 : index
    %c0_43 = arith.constant 0 : index
    %34 = vector.load %arg8[%c0_42, %c0_43] : memref<8x16xf32, #tpu.memory_space<vmem>>, vector<8x16xf32>
    tpu.vector_store %arg8[%c0_42, %c0_43], %33 {strides = array<i32>} : memref<8x16xf32, #tpu.memory_space<vmem>>, vector<8x16xf32>,
    %c0_44 = arith.constant 0 : index
    %c0_45 = arith.constant 0 : index
    %c0_46 = arith.constant 0 : index
    %c4 = arith.constant 4 : index
    %35 = vector.load %arg4[%c0_44, %c0_45, %c0_46, %c4] : memref<1x1x16x22xbf16, #tpu.memory_space<vmem>>, vector<1x1x16x16xbf16>
    %36 = vector.shape_cast %35 : vector<1x1x16x16xbf16> to vector<16x16xbf16>
    %c0_47 = arith.constant 0 : index
    %c0_48 = arith.constant 0 : index
    %37 = vector.load %arg8[%c0_47, %c0_48] : memref<8x16xf32, #tpu.memory_space<vmem>>, vector<8x16xf32>
    %c4_49 = arith.constant 4 : index
    %c0_50 = arith.constant 0 : index
    %c0_51 = arith.constant 0 : index
    %38 = vector.load %arg5[%c4_49, %c0_50, %c0_51] : memref<7x8x16xbf16, #tpu.memory_space<vmem>>, vector<1x8x16xbf16>
    %39 = vector.shape_cast %38 : vector<1x8x16xbf16> to vector<8x16xbf16>
    %cst_52 = arith.constant dense<0.000000e+00> : vector<8x16xf32>
    %40 = tpu.matmul %39, %36, %cst_52 {dimension_numbers = #tpu.dot_dimension_numbers<[1], [0], [0], [1], [0, 0, 1, 1], [], []>} : vector<8x16xbf16>, vector<16x16xbf16>, vector<8x16xf32> -> vector<8x16xf32>
    %41 = arith.addf %37, %40 : vector<8x16xf32>
    %c0_53 = arith.constant 0 : index
    %c0_54 = arith.constant 0 : index
    %42 = vector.load %arg8[%c0_53, %c0_54] : memref<8x16xf32, #tpu.memory_space<vmem>>, vector<8x16xf32>
    tpu.vector_store %arg8[%c0_53, %c0_54], %41 {strides = array<i32>} : memref<8x16xf32, #tpu.memory_space<vmem>>, vector<8x16xf32>,
    %c0_55 = arith.constant 0 : index
    %c0_56 = arith.constant 0 : index
    %c0_57 = arith.constant 0 : index
    %c5 = arith.constant 5 : index
    %43 = vector.load %arg4[%c0_55, %c0_56, %c0_57, %c5] : memref<1x1x16x22xbf16, #tpu.memory_space<vmem>>, vector<1x1x16x16xbf16>
    %44 = vector.shape_cast %43 : vector<1x1x16x16xbf16> to vector<16x16xbf16>
    %c0_58 = arith.constant 0 : index
    %c0_59 = arith.constant 0 : index
    %45 = vector.load %arg8[%c0_58, %c0_59] : memref<8x16xf32, #tpu.memory_space<vmem>>, vector<8x16xf32>
    %c5_60 = arith.constant 5 : index
    %c0_61 = arith.constant 0 : index
    %c0_62 = arith.constant 0 : index
    %46 = vector.load %arg5[%c5_60, %c0_61, %c0_62] : memref<7x8x16xbf16, #tpu.memory_space<vmem>>, vector<1x8x16xbf16>
    %47 = vector.shape_cast %46 : vector<1x8x16xbf16> to vector<8x16xbf16>
    %cst_63 = arith.constant dense<0.000000e+00> : vector<8x16xf32>
    %48 = tpu.matmul %47, %44, %cst_63 {dimension_numbers = #tpu.dot_dimension_numbers<[1], [0], [0], [1], [0, 0, 1, 1], [], []>} : vector<8x16xbf16>, vector<16x16xbf16>, vector<8x16xf32> -> vector<8x16xf32>
    %49 = arith.addf %45, %48 : vector<8x16xf32>
    %c0_64 = arith.constant 0 : index
    %c0_65 = arith.constant 0 : index
    %50 = vector.load %arg8[%c0_64, %c0_65] : memref<8x16xf32, #tpu.memory_space<vmem>>, vector<8x16xf32>
    tpu.vector_store %arg8[%c0_64, %c0_65], %49 {strides = array<i32>} : memref<8x16xf32, #tpu.memory_space<vmem>>, vector<8x16xf32>,
    %c0_66 = arith.constant 0 : index
    %c0_67 = arith.constant 0 : index
    %c0_68 = arith.constant 0 : index
    %c6 = arith.constant 6 : index
    %51 = vector.load %arg4[%c0_66, %c0_67, %c0_68, %c6] : memref<1x1x16x22xbf16, #tpu.memory_space<vmem>>, vector<1x1x16x16xbf16>
    %52 = vector.shape_cast %51 : vector<1x1x16x16xbf16> to vector<16x16xbf16>
    %c0_69 = arith.constant 0 : index
    %c0_70 = arith.constant 0 : index
    %53 = vector.load %arg8[%c0_69, %c0_70] : memref<8x16xf32, #tpu.memory_space<vmem>>, vector<8x16xf32>
    %c6_71 = arith.constant 6 : index
    %c0_72 = arith.constant 0 : index
    %c0_73 = arith.constant 0 : index
    %54 = vector.load %arg5[%c6_71, %c0_72, %c0_73] : memref<7x8x16xbf16, #tpu.memory_space<vmem>>, vector<1x8x16xbf16>
    %55 = vector.shape_cast %54 : vector<1x8x16xbf16> to vector<8x16xbf16>
    %cst_74 = arith.constant dense<0.000000e+00> : vector<8x16xf32>
    %56 = tpu.matmul %55, %52, %cst_74 {dimension_numbers = #tpu.dot_dimension_numbers<[1], [0], [0], [1], [0, 0, 1, 1], [], []>} : vector<8x16xbf16>, vector<16x16xbf16>, vector<8x16xf32> -> vector<8x16xf32>
    %57 = arith.addf %53, %56 : vector<8x16xf32>
    %c0_75 = arith.constant 0 : index
    %c0_76 = arith.constant 0 : index
    %58 = vector.load %arg8[%c0_75, %c0_76] : memref<8x16xf32, #tpu.memory_space<vmem>>, vector<8x16xf32>
    tpu.vector_store %arg8[%c0_75, %c0_76], %57 {strides = array<i32>} : memref<8x16xf32, #tpu.memory_space<vmem>>, vector<8x16xf32>,
    %c0_i32_77 = arith.constant 0 : i32
    %59 = arith.cmpi eq, %arg3, %c0_i32_77 : i32
    %60 = arith.extui %59 : i1 to i32
    %c0_i32_78 = arith.constant 0 : i32
    %61 = arith.cmpi ne, %60, %c0_i32_78 : i32
    scf.if %61 {
      %c0_79 = arith.constant 0 : index
      %c0_80 = arith.constant 0 : index
      %62 = vector.load %arg8[%c0_79, %c0_80] : memref<8x16xf32, #tpu.memory_space<vmem>>, vector<8x16xf32>
      %cst_81 = arith.constant 0.000000e+00 : f32
      %63 = vector.broadcast %cst_81 : f32 to vector<8x16xf32>
      %64 = arith.cmpf oge, %62, %63 : vector<8x16xf32>
      %cst_82 = arith.constant 2.000000e-01 : f32
      %65 = vector.broadcast %cst_82 : f32 to vector<8x16xf32>
      %66 = arith.mulf %65, %62 : vector<8x16xf32>
      %67 = arith.select %64, %62, %66 : vector<8x16xi1>, vector<8x16xf32>
      %c0_83 = arith.constant 0 : index
      %c0_84 = arith.constant 0 : index
      %c0_85 = arith.constant 0 : index
      %68 = vector.load %arg7[%c0_83, %c0_84, %c0_85] : memref<1x8x16xf32, #tpu.memory_space<vmem>>, vector<1x8x16xf32>
      %69 = vector.shape_cast %68 : vector<1x8x16xf32> to vector<8x16xf32>
      %70 = vector.shape_cast %67 : vector<8x16xf32> to vector<1x8x16xf32>
      tpu.vector_store %arg7[%c0_83, %c0_84, %c0_85], %70 {strides = array<i32>} : memref<1x8x16xf32, #tpu.memory_space<vmem>>, vector<1x8x16xf32>,
    } else {
    }
    return
  }
  func.func @transform_0(%arg0: i32, %arg1: i32, %arg2: i32, %arg3: i32) -> (i32, i32, i32, i32) {
    %c0_i32 = arith.constant 0 : i32
    %c0_i32_0 = arith.constant 0 : i32
    return %arg1, %arg2, %arg3, %c0_i32 : i32, i32, i32, i32
  }
  func.func @transform_1(%arg0: i32, %arg1: i32, %arg2: i32, %arg3: i32) -> (i32, i32, i32) {
    %c0_i32 = arith.constant 0 : i32
    %c0_i32_0 = arith.constant 0 : i32
    return %c0_i32, %arg0, %arg3 : i32, i32, i32
  }
  func.func @transform_2(%arg0: i32, %arg1: i32, %arg2: i32, %arg3: i32) -> (i32, i32) {
    %c0_i32 = arith.constant 0 : i32
    %c0_i32_0 = arith.constant 0 : i32
    return %arg0, %c0_i32 : i32, i32
  }
  func.func @transform_3(%arg0: i32, %arg1: i32, %arg2: i32, %arg3: i32) -> (i32, i32, i32) {
    %c0_i32 = arith.constant 0 : i32
    return %arg1, %arg0, %arg2 : i32, i32, i32
  }
}

</mosaic_0001>

<llo_original>
// kernel: tpu_custom_call.1
$region0: #{tpu_custom_call.1}
  #allocation0 [shape = 'u32[]', space=smem, size = 0x4, offset = 0x4, fixed_abs, tag = 'smem constant byte address 0x4 - core index']
  #allocation1 [shape = 'u32[144,128]{1,0:T(1,128)}', space=vmem, size = 0x12000, scoped, tag = 'internal scratch']
  #allocation2 [shape = 'f32[8,16]{1,0:T(8,128)}', space=vmem, size = 0x1000, scoped, tag = 'scratch operand']
  %s0 = inlined_call_operand.hbm [shape: bf16[2,1,16,22], index: 0, kind: input, shape index: {}]
  %s1 = inlined_call_operand.hbm [shape: bf16[7,8,16], index: 1, kind: input, shape index: {}]
  %s2 = inlined_call_operand.vmem [shape: f32[8,1], index: 2, kind: input, shape index: {}]
  %s3 = inlined_call_operand.hbm [shape: f32[2,8,16], index: 3, kind: output, shape index: {}]
  %s4 = sld [smem:[#allocation0]]
  $region61: #{tpu_custom_call.1} parent=0
    _
  %s6 = ssub.s32 1, %s4
  %s7 = scalar_select 0, %s6, %s4
  $region1: #{tpu_custom_call.1} parent=0
    #allocation3 [shape = 'u8[8192]{0}', space=vmem, size = 0x2000, scoped, tag = 'input window, operand 0']
    #allocation4 [shape = 's32[2]{0}', space=sflag, size = 0x8, scoped, tag = 'scoped memory for tpu_custom_call.1']
    #allocation5 [shape = 's32[2]{0}', space=sflag, size = 0x8, scoped, tag = 'scoped memory for tpu_custom_call.1']
    #allocation6 [shape = 'u8[14336]{0}', space=vmem, size = 0x3800, scoped, tag = 'input window, operand 1, single buffered']
    #allocation7 [shape = 's32[1]{0}', space=sflag, size = 0x4, scoped, tag = 'scoped memory for tpu_custom_call.1']
    #allocation8 [shape = 'u8[8192]{0}', space=vmem, size = 0x2000, scoped, tag = 'output window, operand 0']
    %8 = vsyncpa [#allocation4], 0
    %s9 = scalar_lea.sflag [#allocation4], 1
    %10 = vsyncpa %s9, 0
    %11 = vsyncpa [#allocation7], 0
    %12 = vsyncpa [#allocation5], 0
    %s13 = scalar_lea.sflag [#allocation5], 1
    %14 = vsyncpa %s13, 0
    loop: start=0, step=1, limit=4
    $region2: #{tpu_custom_call.1} parent=1 // loop_pre_header
      _
    $region3: #{tpu_custom_call.1} parent=1 // loop_header
      %s16 = sphi 0, %s20
      %p17 = scmp.ge.s32.totalorder %s16, 4
      %s23 = sphi 0, %s49
      %s24 = sphi 0, %s45
      %s25 = sphi 0, %s41
      %s26 = sphi 0, %s37
      %s27 = sphi 0, %s23
      %s28 = sphi 0, %s24
      %s29 = sphi 0, %s25
      %s30 = sphi 0, %s26
      %s31 = sphi 0, %s27
      %s32 = sphi 0, %s28
      %s33 = sphi 0, %s29
      %s34 = sphi 0, %s30
      %s56 = sphi 0, %s58
      %s59 = sphi 0, %s56
      %s60 = sphi 0, %s59
      %s76 = sphi 0, %s60
      %s84 = sphi 0, %s86
      %s87 = sphi 0, %s84
      %s88 = sphi 0, %s87
      %s104 = sphi 0, %s88
      %s110 = sphi 0, %s112
      %s113 = sphi 0, %s110
      %s114 = sphi 0, %s113
      %s130 = sphi 0, %s114
      %s140 = sphi 0, %s142
      %s143 = sphi 0, %s140
      %s144 = sphi 0, %s143
      %s160 = sphi 0, %s144
    $region4: #{tpu_custom_call.1} parent=1 // loop_header_branch
      %19 = sbr.rel (%p17) target = $region8
    $region5: #{tpu_custom_call.1} parent=1 // loop_body
      %s21 = ssub.s32 %s16, 1
      %s22 = ssub.s32 %s16, 2
      %s35 = sadd.s32 1, %s26
      %p36 = scmp.ge.s32.totalorder %s35, 1
      %s37 = scalar_select %p36, 0, %s35
      %s38 = sadd.s32 1, %s25
      %s39 = scalar_select %p36, %s38, %s25
      %p40 = scmp.ge.s32.totalorder %s39, 1
      %s41 = scalar_select %p40, 0, %s39
      %s42 = sadd.s32 1, %s24
      %s43 = scalar_select %p40, %s42, %s24
      %p44 = scmp.ge.s32.totalorder %s43, 2
      %s45 = scalar_select %p44, 0, %s43
      %s46 = sadd.s32 1, %s23
      %s47 = scalar_select %p44, %s46, %s23
      %p48 = scmp.ge.s32.totalorder %s47, 1
      %s49 = scalar_select %p48, 0, %s47
      %s50 = ssub.s32 %s24, %s45
      %s51 = ssub.s32 %s25, %s41
      %s52 = sor.u32 %s50, %s51
      %s53 = ssub.s32 %s26, %s37
      %s54 = sor.u32 %s52, %s53
      %p55 = scmp.eq.s32.totalorder %s54, 0
      %s57 = sadd.s32 %s56, 1
      %s58 = scalar_select %p55, %s56, %s57
      %p61 = pneg %p55
      %p62 = scmp.eq.s32.totalorder %s16, 1
      %p63 = por %p61, %p62
      %p64 = scmp.ne.s32.totalorder %s56, %s59
      %p65 = scmp.eq.s32.totalorder %s16, 0
      %p66 = por %p64, %p65
      %p67 = scmp.ne.s32.totalorder %s56, %s59
      %p68 = scmp.eq.s32.totalorder %s21, 1
      %p69 = por %p67, %p68
      %p70 = scmp.ne.s32.totalorder %s59, %s60
      %p71 = scmp.eq.s32.totalorder %s21, 0
      %p72 = por %p70, %p71
      %p73 = scmp.ne.s32.totalorder %s59, %s60
      %p74 = scmp.eq.s32.totalorder %s22, 1
      %p75 = por %p73, %p74
      %p77 = scmp.ne.s32.totalorder %s60, %s76
      %p78 = scmp.eq.s32.totalorder %s22, 0
      %p79 = por %p77, %p78
      %s80 = ssub.s32 %s23, %s49
      %s81 = ssub.s32 %s26, %s37
      %s82 = sor.u32 %s80, %s81
      %p83 = scmp.eq.s32.totalorder %s82, 0
      %s85 = sadd.s32 %s84, 1
      %s86 = scalar_select %p83, %s84, %s85
      %p89 = pneg %p83
      %p90 = scmp.eq.s32.totalorder %s16, 1
      %p91 = por %p89, %p90
      %p92 = scmp.ne.s32.totalorder %s84, %s87
      %p93 = scmp.eq.s32.totalorder %s16, 0
      %p94 = por %p92, %p93
      %p95 = scmp.ne.s32.totalorder %s84, %s87
      %p96 = scmp.eq.s32.totalorder %s21, 1
      %p97 = por %p95, %p96
      %p98 = scmp.ne.s32.totalorder %s87, %s88
      %p99 = scmp.eq.s32.totalorder %s21, 0
      %p100 = por %p98, %p99
      %p101 = scmp.ne.s32.totalorder %s87, %s88
      %p102 = scmp.eq.s32.totalorder %s22, 1
      %p103 = por %p101, %p102
      %p105 = scmp.ne.s32.totalorder %s88, %s104
      %p106 = scmp.eq.s32.totalorder %s22, 0
      %p107 = por %p105, %p106
      %s108 = ssub.s32 %s23, %s49
      %p109 = scmp.eq.s32.totalorder %s108, 0
      %s111 = sadd.s32 %s110, 1
      %s112 = scalar_select %p109, %s110, %s111
      %p115 = pneg %p109
      %p116 = scmp.eq.s32.totalorder %s16, 1
      %p117 = por %p115, %p116
      %p118 = scmp.ne.s32.totalorder %s110, %s113
      %p119 = scmp.eq.s32.totalorder %s16, 0
      %p120 = por %p118, %p119
      %p121 = scmp.ne.s32.totalorder %s110, %s113
      %p122 = scmp.eq.s32.totalorder %s21, 1
      %p123 = por %p121, %p122
      %p124 = scmp.ne.s32.totalorder %s113, %s114
      %p125 = scmp.eq.s32.totalorder %s21, 0
      %p126 = por %p124, %p125
      %p127 = scmp.ne.s32.totalorder %s113, %s114
      %p128 = scmp.eq.s32.totalorder %s22, 1
      %p129 = por %p127, %p128
      %p131 = scmp.ne.s32.totalorder %s114, %s130
      %p132 = scmp.eq.s32.totalorder %s22, 0
      %p133 = por %p131, %p132
      %s134 = ssub.s32 %s24, %s45
      %s135 = ssub.s32 %s23, %s49
      %s136 = sor.u32 %s134, %s135
      %s137 = ssub.s32 %s25, %s41
      %s138 = sor.u32 %s136, %s137
      %p139 = scmp.eq.s32.totalorder %s138, 0
      %s141 = sadd.s32 %s140, 1
      %s142 = scalar_select %p139, %s140, %s141
      %p145 = pneg %p139
      %p146 = scmp.eq.s32.totalorder %s16, 1
      %p147 = por %p145, %p146
      %p148 = scmp.ne.s32.totalorder %s140, %s143
      %p149 = scmp.eq.s32.totalorder %s16, 0
      %p150 = por %p148, %p149
      %p151 = scmp.ne.s32.totalorder %s140, %s143
      %p152 = scmp.eq.s32.totalorder %s21, 1
      %p153 = por %p151, %p152
      %p154 = scmp.ne.s32.totalorder %s143, %s144
      %p155 = scmp.eq.s32.totalorder %s21, 0
      %p156 = por %p154, %p155
      %p157 = scmp.ne.s32.totalorder %s143, %s144
      %p158 = scmp.eq.s32.totalorder %s22, 1
      %p159 = por %p157, %p158
      %p161 = scmp.ne.s32.totalorder %s144, %s160
      %p162 = scmp.eq.s32.totalorder %s22, 0
      %p163 = por %p161, %p162
      %p164 = scmp.le.s32.totalorder 1, %s16
      %p165 = scmp.lt.s32.totalorder %s16, 3
      %p166 = pnand %p164, %p165
      %p167 = pneg %p166
      // Predicated region
      $region9: #{tpu_custom_call.1} parent=5 // pred_check
        _
      $region10: #{tpu_custom_call.1} parent=5 // pred_check_branch
        %169 = sbr.rel (%p166) target = $region12
      $region11: #{tpu_custom_call.1} parent=5 // pred_region
        %s170 = ssub.s32 %s16, 1
        // Predicated region
        $region13: #{tpu_custom_call.1} parent=11 // pred_check
          %p171 = pneg %p100
        $region14: #{tpu_custom_call.1} parent=11 // pred_check_branch
          %173 = sbr.rel (%p171) target = $region16
        $region15: #{tpu_custom_call.1} parent=11 // pred_region
          %s175 = ssub.s32 448, 448
          %176 = vsyncadd [#allocation7], %s175
          %s177 = sadd.s32 %s30, %s27
          %s178 = smul.addr %s177, 64
          %s179 = scalar_lea.hbm %s1, %s178
          %s180 = sshll.u32 [#allocation6], 4
          %s181 = int_to_ptr.vmem [resolvable:$true] %s180
          %186 = dma.hbm_to_vmem [thread:$0]  %s179, 448, %s181, [#allocation7], 64, 64, 4
        $region16: #{tpu_custom_call.1} parent=11 // pred_fallthru
          _
        // Predicated region
        $region17: #{tpu_custom_call.1} parent=11 // pred_check
          %p187 = pneg %p126
        $region18: #{tpu_custom_call.1} parent=11 // pred_check_branch
          %189 = sbr.rel (%p187) target = $region20
        $region19: #{tpu_custom_call.1} parent=11 // pred_region
          %p190 = scmp.lt.s32.totalorder %s27, 0
          %s191 = scalar_select %p190, %s27, 0
          %s192 = smul.addr %s191, 8
          %s193 = scalar_lea.vmem %s2, %s192
        $region20: #{tpu_custom_call.1} parent=11 // pred_fallthru
          _
      $region12: #{tpu_custom_call.1} parent=5 // pred_fallthru
        _
      %p194 = scmp.lt.s32.totalorder %s16, 2
      // Predicated region
      $region21: #{tpu_custom_call.1} parent=5 // pred_check
        %p195 = pneg %p194
      $region22: #{tpu_custom_call.1} parent=5 // pred_check_branch
        %197 = sbr.rel (%p195) target = $region24
      $region23: #{tpu_custom_call.1} parent=5 // pred_region
        // Predicated region
        $region25: #{tpu_custom_call.1} parent=23 // pred_check
          %p198 = pneg %p66
        $region26: #{tpu_custom_call.1} parent=23 // pred_check_branch
          %200 = sbr.rel (%p198) target = $region28
        $region27: #{tpu_custom_call.1} parent=23 // pred_region
          %s201 = sand.u32 %s56, 1
          %s202 = scalar_lea.sflag [#allocation4], %s201
          %s203 = sand.u32 %s56, 1
          %s204 = smul.addr %s203, 8
          %s205 = scalar_lea.vmem [#allocation3], %s204
          %s206 = smul.u32 2, %s26
          %s208 = ssub.s32 128, 128
          %209 = vsyncadd %s202, %s208
          %s210 = smul.addr %s25, 2
          %s211 = sadd.s32 %s206, %s210
          %s212 = smul.addr %s24, 2
          %s213 = sadd.s32 %s211, %s212
          %s214 = smul.addr %s213, 64
          %s215 = scalar_lea.hbm %s0, %s214
          %s216 = sshll.u32 %s205, 4
          %s217 = int_to_ptr.vmem [resolvable:$true] %s216
          %222 = dma.hbm_to_vmem [thread:$0]  %s215, 128, %s217, %s202, 64, 64, 4
        $region28: #{tpu_custom_call.1} parent=23 // pred_fallthru
          _
      $region24: #{tpu_custom_call.1} parent=5 // pred_fallthru
        _
      %p223 = scmp.le.s32.totalorder 1, %s16
      %p224 = scmp.lt.s32.totalorder %s16, 3
      %p225 = pnand %p223, %p224
      %p226 = pneg %p225
      // Predicated region
      $region29: #{tpu_custom_call.1} parent=5 // pred_check
        _
      $region30: #{tpu_custom_call.1} parent=5 // pred_check_branch
        %228 = sbr.rel (%p225) target = $region32
      $region31: #{tpu_custom_call.1} parent=5 // pred_region
        %s229 = ssub.s32 %s16, 1
        %s230 = sand.u32 %s59, 1
        %s231 = scalar_lea.sflag [#allocation4], %s230
        %s232 = sand.u32 %s59, 1
        %s233 = smul.addr %s232, 8
        %s234 = scalar_lea.vmem [#allocation3], %s233
        // Predicated region
        $region33: #{tpu_custom_call.1} parent=31 // pred_check
          %p235 = pneg %p72
        $region34: #{tpu_custom_call.1} parent=31 // pred_check_branch
          %237 = sbr.rel (%p235) target = $region36
        $region35: #{tpu_custom_call.1} parent=31 // pred_region
          %238 = dma.done %s231, 128
        $region36: #{tpu_custom_call.1} parent=31 // pred_fallthru
          _
        // Predicated region
        $region37: #{tpu_custom_call.1} parent=31 // pred_check
          %p239 = pneg %p100
        $region38: #{tpu_custom_call.1} parent=31 // pred_check_branch
          %241 = sbr.rel (%p239) target = $region40
        $region39: #{tpu_custom_call.1} parent=31 // pred_region
          %242 = dma.done [#allocation7], 448
        $region40: #{tpu_custom_call.1} parent=31 // pred_fallthru
          _
        %s243 = sand.u32 %s59, 1
        %s244 = scalar_lea.sflag [#allocation4], %s243
        %s245 = sand.u32 %s59, 1
        %s246 = smul.addr %s245, 8
        %s247 = scalar_lea.vmem [#allocation3], %s246
        %p248 = pneg %p72
        %p249 = pneg %p69
        %p250 = pneg %p100
        %p251 = pneg %p97
        %p252 = scmp.lt.s32.totalorder %s27, 0
        %s253 = scalar_select %p252, %s27, 0
        %s254 = smul.addr %s253, 8
        %s255 = scalar_lea.vmem %s2, %s254
        %p256 = pneg %p126
        %p257 = pneg %p123
        %p258 = pneg %p156
        %p259 = pneg %p153
        %s260 = sand.u32 %s143, 1
        %s261 = scalar_lea.sflag [#allocation5], %s260
        %s262 = sand.u32 %s143, 1
        %s263 = smul.addr %s262, 8
        %s264 = scalar_lea.vmem [#allocation8], %s263
        %s265 = smul.u32 2, %s30
        %p266 = scmp.lt.s32.totalorder %s27, 0
        %s267 = scalar_select %p266, %s27, 0
        %s268 = smul.addr %s267, 8
        %s269 = scalar_lea.vmem %s2, %s268
        %p271 = scmp.eq.s32.totalorder %s30, 0
        // Predicated region
        $region41: #{tpu_custom_call.1} parent=31 // pred_check
          %p272 = pneg %p271
        $region42: #{tpu_custom_call.1} parent=31 // pred_check_branch
          %274 = sbr.rel (%p272) target = $region44
        $region43: #{tpu_custom_call.1} parent=31 // pred_region
          %v275 = vld [vmem:[%s269] sm:$0xff]
          %277 = vset.pattern.permute.xlu0 0
          %278 = vperm.xlu0 %277, %v275
          %v279 = vpop.permute.xlu0 %278
          %v281 = vadd.f32 %v279, 0.0
          %vm282 = vcmask 130048
          %283 = vst.msk [vmem:[#allocation2] sm:$0xff] %vm282, %v281
        $region44: #{tpu_custom_call.1} parent=31 // pred_fallthru
          _
        %v284 = vld [vmem:[%s234] sm:$0xf]
        %v285 = vld [vmem:[%s234 + $0x4] sm:$0xf]
        %v286 = vld [vmem:[#allocation2] sm:$0xff]
        %v287 = vld [vmem:[#allocation6] sm:$0xf]
        %v290 = vunpack.c.l.b16 %v284
        %v291 = vunpack.c.l.b16 %v285
        %v292 = vpack.c.b16 %v291, %v290
        %vm294 = vcmask 130048
        %v296 = vsel %vm294, %v287, 0
        %298 = vmatprep.subr.bf16.mxu0 0
        %299 = vmatpush1.bf16.msra.mxu0 0
        %300 = vmatprep.subr.bf16.mxu0 0
        %301 = vmatpush1.bf16.msra.mxu0 0
        %302 = vmatprep.subr.bf16.mxu0 0
        %303 = vmatpush1.bf16.msra.mxu0 0
        %304 = vmatprep.subr.bf16.mxu0 0
        %305 = vmatpush1.bf16.msra.mxu0 0
        %306 = vmatprep.subr.bf16.mxu0 0
        %307 = vmatpush1.bf16.msra.mxu0 0
        %308 = vmatprep.subr.bf16.mxu0 0
        %309 = vmatpush1.bf16.msra.mxu0 0
        %310 = vmatprep.subr.bf16.mxu0 0
        %311 = vmatpush1.bf16.msra.mxu0 0
        %312 = vmatprep.subr.bf16.mxu0 0
        %313 = vmatpush1.bf16.msra.mxu0 %v292
        %314 = vmatprep.subr.bf16.mxu0 0
        %315 = vmatpush2.bf16.msra.mxu0 0
        %316 = vmatprep.subr.bf16.mxu0 0
        %317 = vmatpush2.bf16.msra.mxu0 0
        %318 = vmatprep.subr.bf16.mxu0 0
        %319 = vmatpush2.bf16.msra.mxu0 0
        %320 = vmatprep.subr.bf16.mxu0 0
        %321 = vmatpush2.bf16.msra.mxu0 0
        %322 = vmatprep.subr.bf16.mxu0 0
        %323 = vmatpush2.bf16.msra.mxu0 0
        %324 = vmatprep.subr.bf16.mxu0 0
        %325 = vmatpush2.bf16.msra.mxu0 0
        %326 = vmatprep.subr.bf16.mxu0 0
        %327 = vmatpush2.bf16.msra.mxu0 0
        %328 = vmatprep.subr.bf16.mxu0 0
        %329 = vmatpush2.bf16.msra.mxu0 0
        %330 = vmatprep.mubr.bf16.mxu0 0
        %331 = vmatmul.mubr.bf16.gmra.mxu0 %v296
        %v332 = vpop.f32.mrf.mxu0
        %v333 = vadd.f32 0.0, %v332
        %v334 = vpop.f32.mrf.mxu0
        %v335 = vpop.f32.mrf.mxu0
        %v336 = vpop.f32.mrf.mxu0
        %337 = vdwg.mxu0
        %v338 = vadd.f32 %v286, %v333
        %339 = vst.msk [vmem:[#allocation2] sm:$0xff] %vm294, %v338
        %v340 = vld [vmem:[%s234] sm:$0xf]
        %v341 = vld [vmem:[%s234 + $0x4] sm:$0xf]
        %v342 = vld [vmem:[#allocation2] sm:$0xff]
        %s343 = scalar_lea.vmem [#allocation6], 4
        %v344 = vld [vmem:[%s343] sm:$0xf]
        %v347 = vunpack.c.l.b16 %v340
        %v348 = vunpack.c.l.b16 %v341
        %v349 = vpack.c.b16 %v348, %v347
        %350 = vrot.lane.b32.xlu0 %v349, 127
        %v351 = vpop.permute.xlu0 %350
        %v354 = vsel %vm294, %v344, 0
        %356 = vmatprep.subr.bf16.mxu0 0
        %357 = vmatpush1.bf16.msra.mxu0 0
        %358 = vmatprep.subr.bf16.mxu0 0
        %359 = vmatpush1.bf16.msra.mxu0 0
        %360 = vmatprep.subr.bf16.mxu0 0
        %361 = vmatpush1.bf16.msra.mxu0 0
        %362 = vmatprep.subr.bf16.mxu0 0
        %363 = vmatpush1.bf16.msra.mxu0 0
        %364 = vmatprep.subr.bf16.mxu0 0
        %365 = vmatpush1.bf16.msra.mxu0 0
        %366 = vmatprep.subr.bf16.mxu0 0
        %367 = vmatpush1.bf16.msra.mxu0 0
        %368 = vmatprep.subr.bf16.mxu0 0
        %369 = vmatpush1.bf16.msra.mxu0 0
        %370 = vmatprep.subr.bf16.mxu0 0
        %371 = vmatpush1.bf16.msra.mxu0 %v351
        %372 = vmatprep.subr.bf16.mxu0 0
        %373 = vmatpush2.bf16.msra.mxu0 0
        %374 = vmatprep.subr.bf16.mxu0 0
        %375 = vmatpush2.bf16.msra.mxu0 0
        %376 = vmatprep.subr.bf16.mxu0 0
        %377 = vmatpush2.bf16.msra.mxu0 0
        %378 = vmatprep.subr.bf16.mxu0 0
        %379 = vmatpush2.bf16.msra.mxu0 0
        %380 = vmatprep.subr.bf16.mxu0 0
        %381 = vmatpush2.bf16.msra.mxu0 0
        %382 = vmatprep.subr.bf16.mxu0 0
        %383 = vmatpush2.bf16.msra.mxu0 0
        %384 = vmatprep.subr.bf16.mxu0 0
        %385 = vmatpush2.bf16.msra.mxu0 0
        %386 = vmatprep.subr.bf16.mxu0 0
        %387 = vmatpush2.bf16.msra.mxu0 0
        %388 = vmatprep.mubr.bf16.mxu0 0
        %389 = vmatmul.mubr.bf16.gmra.mxu0 %v354
        %v390 = vpop.f32.mrf.mxu0
        %v391 = vadd.f32 0.0, %v390
        %v392 = vpop.f32.mrf.mxu0
        %v393 = vpop.f32.mrf.mxu0
        %v394 = vpop.f32.mrf.mxu0
        %395 = vdwg.mxu0
        %v396 = vadd.f32 %v342, %v391
        %397 = vst.msk [vmem:[#allocation2] sm:$0xff] %vm294, %v396
        %v398 = vld [vmem:[%s234] sm:$0xf]
        %v399 = vld [vmem:[%s234 + $0x4] sm:$0xf]
        %v400 = vld [vmem:[#allocation2] sm:$0xff]
        %s401 = scalar_lea.vmem [#allocation6], 8
        %v402 = vld [vmem:[%s401] sm:$0xf]
        %v405 = vunpack.c.l.b16 %v398
        %v406 = vunpack.c.l.b16 %v399
        %v407 = vpack.c.b16 %v406, %v405
        %408 = vrot.lane.b32.xlu0 %v407, 126
        %v409 = vpop.permute.xlu0 %408
        %v412 = vsel %vm294, %v402, 0
        %414 = vmatprep.subr.bf16.mxu0 0
        %415 = vmatpush1.bf16.msra.mxu0 0
        %416 = vmatprep.subr.bf16.mxu0 0
        %417 = vmatpush1.bf16.msra.mxu0 0
        %418 = vmatprep.subr.bf16.mxu0 0
        %419 = vmatpush1.bf16.msra.mxu0 0
        %420 = vmatprep.subr.bf16.mxu0 0
        %421 = vmatpush1.bf16.msra.mxu0 0
        %422 = vmatprep.subr.bf16.mxu0 0
        %423 = vmatpush1.bf16.msra.mxu0 0
        %424 = vmatprep.subr.bf16.mxu0 0
        %425 = vmatpush1.bf16.msra.mxu0 0
        %426 = vmatprep.subr.bf16.mxu0 0
        %427 = vmatpush1.bf16.msra.mxu0 0
        %428 = vmatprep.subr.bf16.mxu0 0
        %429 = vmatpush1.bf16.msra.mxu0 %v409
        %430 = vmatprep.subr.bf16.mxu0 0
        %431 = vmatpush2.bf16.msra.mxu0 0
        %432 = vmatprep.subr.bf16.mxu0 0
        %433 = vmatpush2.bf16.msra.mxu0 0
        %434 = vmatprep.subr.bf16.mxu0 0
        %435 = vmatpush2.bf16.msra.mxu0 0
        %436 = vmatprep.subr.bf16.mxu0 0
        %437 = vmatpush2.bf16.msra.mxu0 0
        %438 = vmatprep.subr.bf16.mxu0 0
        %439 = vmatpush2.bf16.msra.mxu0 0
        %440 = vmatprep.subr.bf16.mxu0 0
        %441 = vmatpush2.bf16.msra.mxu0 0
        %442 = vmatprep.subr.bf16.mxu0 0
        %443 = vmatpush2.bf16.msra.mxu0 0
        %444 = vmatprep.subr.bf16.mxu0 0
        %445 = vmatpush2.bf16.msra.mxu0 0
        %446 = vmatprep.mubr.bf16.mxu0 0
        %447 = vmatmul.mubr.bf16.gmra.mxu0 %v412
        %v448 = vpop.f32.mrf.mxu0
        %v449 = vadd.f32 0.0, %v448
        %v450 = vpop.f32.mrf.mxu0
        %v451 = vpop.f32.mrf.mxu0
        %v452 = vpop.f32.mrf.mxu0
        %453 = vdwg.mxu0
        %v454 = vadd.f32 %v400, %v449
        %455 = vst.msk [vmem:[#allocation2] sm:$0xff] %vm294, %v454
        %v456 = vld [vmem:[%s234] sm:$0xf]
        %v457 = vld [vmem:[%s234 + $0x4] sm:$0xf]
        %v458 = vld [vmem:[#allocation2] sm:$0xff]
        %s459 = scalar_lea.vmem [#allocation6], 12
        %v460 = vld [vmem:[%s459] sm:$0xf]
        %v463 = vunpack.c.l.b16 %v456
        %v464 = vunpack.c.l.b16 %v457
        %v465 = vpack.c.b16 %v464, %v463
        %466 = vrot.lane.b32.xlu0 %v465, 125
        %v467 = vpop.permute.xlu0 %466
        %v470 = vsel %vm294, %v460, 0
        %472 = vmatprep.subr.bf16.mxu0 0
        %473 = vmatpush1.bf16.msra.mxu0 0
        %474 = vmatprep.subr.bf16.mxu0 0
        %475 = vmatpush1.bf16.msra.mxu0 0
        %476 = vmatprep.subr.bf16.mxu0 0
        %477 = vmatpush1.bf16.msra.mxu0 0
        %478 = vmatprep.subr.bf16.mxu0 0
        %479 = vmatpush1.bf16.msra.mxu0 0
        %480 = vmatprep.subr.bf16.mxu0 0
        %481 = vmatpush1.bf16.msra.mxu0 0
        %482 = vmatprep.subr.bf16.mxu0 0
        %483 = vmatpush1.bf16.msra.mxu0 0
        %484 = vmatprep.subr.bf16.mxu0 0
        %485 = vmatpush1.bf16.msra.mxu0 0
        %486 = vmatprep.subr.bf16.mxu0 0
        %487 = vmatpush1.bf16.msra.mxu0 %v467
        %488 = vmatprep.subr.bf16.mxu0 0
        %489 = vmatpush2.bf16.msra.mxu0 0
        %490 = vmatprep.subr.bf16.mxu0 0
        %491 = vmatpush2.bf16.msra.mxu0 0
        %492 = vmatprep.subr.bf16.mxu0 0
        %493 = vmatpush2.bf16.msra.mxu0 0
        %494 = vmatprep.subr.bf16.mxu0 0
        %495 = vmatpush2.bf16.msra.mxu0 0
        %496 = vmatprep.subr.bf16.mxu0 0
        %497 = vmatpush2.bf16.msra.mxu0 0
        %498 = vmatprep.subr.bf16.mxu0 0
        %499 = vmatpush2.bf16.msra.mxu0 0
        %500 = vmatprep.subr.bf16.mxu0 0
        %501 = vmatpush2.bf16.msra.mxu0 0
        %502 = vmatprep.subr.bf16.mxu0 0
        %503 = vmatpush2.bf16.msra.mxu0 0
        %504 = vmatprep.mubr.bf16.mxu0 0
        %505 = vmatmul.mubr.bf16.gmra.mxu0 %v470
        %v506 = vpop.f32.mrf.mxu0
        %v507 = vadd.f32 0.0, %v506
        %v508 = vpop.f32.mrf.mxu0
        %v509 = vpop.f32.mrf.mxu0
        %v510 = vpop.f32.mrf.mxu0
        %511 = vdwg.mxu0
        %v512 = vadd.f32 %v458, %v507
        %513 = vst.msk [vmem:[#allocation2] sm:$0xff] %vm294, %v512
        %v514 = vld [vmem:[%s234] sm:$0xf]
        %v515 = vld [vmem:[%s234 + $0x4] sm:$0xf]
        %v516 = vld [vmem:[#allocation2] sm:$0xff]
        %s517 = scalar_lea.vmem [#allocation6], 16
        %v518 = vld [vmem:[%s517] sm:$0xf]
        %v521 = vunpack.c.l.b16 %v514
        %v522 = vunpack.c.l.b16 %v515
        %v523 = vpack.c.b16 %v522, %v521
        %524 = vrot.lane.b32.xlu0 %v523, 124
        %v525 = vpop.permute.xlu0 %524
        %v528 = vsel %vm294, %v518, 0
        %530 = vmatprep.subr.bf16.mxu0 0
        %531 = vmatpush1.bf16.msra.mxu0 0
        %532 = vmatprep.subr.bf16.mxu0 0
        %533 = vmatpush1.bf16.msra.mxu0 0
        %534 = vmatprep.subr.bf16.mxu0 0
        %535 = vmatpush1.bf16.msra.mxu0 0
        %536 = vmatprep.subr.bf16.mxu0 0
        %537 = vmatpush1.bf16.msra.mxu0 0
        %538 = vmatprep.subr.bf16.mxu0 0
        %539 = vmatpush1.bf16.msra.mxu0 0
        %540 = vmatprep.subr.bf16.mxu0 0
        %541 = vmatpush1.bf16.msra.mxu0 0
        %542 = vmatprep.subr.bf16.mxu0 0
        %543 = vmatpush1.bf16.msra.mxu0 0
        %544 = vmatprep.subr.bf16.mxu0 0
        %545 = vmatpush1.bf16.msra.mxu0 %v525
        %546 = vmatprep.subr.bf16.mxu0 0
        %547 = vmatpush2.bf16.msra.mxu0 0
        %548 = vmatprep.subr.bf16.mxu0 0
        %549 = vmatpush2.bf16.msra.mxu0 0
        %550 = vmatprep.subr.bf16.mxu0 0
        %551 = vmatpush2.bf16.msra.mxu0 0
        %552 = vmatprep.subr.bf16.mxu0 0
        %553 = vmatpush2.bf16.msra.mxu0 0
        %554 = vmatprep.subr.bf16.mxu0 0
        %555 = vmatpush2.bf16.msra.mxu0 0
        %556 = vmatprep.subr.bf16.mxu0 0
        %557 = vmatpush2.bf16.msra.mxu0 0
        %558 = vmatprep.subr.bf16.mxu0 0
        %559 = vmatpush2.bf16.msra.mxu0 0
        %560 = vmatprep.subr.bf16.mxu0 0
        %561 = vmatpush2.bf16.msra.mxu0 0
        %562 = vmatprep.mubr.bf16.mxu0 0
        %563 = vmatmul.mubr.bf16.gmra.mxu0 %v528
        %v564 = vpop.f32.mrf.mxu0
        %v565 = vadd.f32 0.0, %v564
        %v566 = vpop.f32.mrf.mxu0
        %v567 = vpop.f32.mrf.mxu0
        %v568 = vpop.f32.mrf.mxu0
        %569 = vdwg.mxu0
        %v570 = vadd.f32 %v516, %v565
        %571 = vst.msk [vmem:[#allocation2] sm:$0xff] %vm294, %v570
        %v572 = vld [vmem:[%s234] sm:$0xf]
        %v573 = vld [vmem:[%s234 + $0x4] sm:$0xf]
        %v574 = vld [vmem:[#allocation2] sm:$0xff]
        %s575 = scalar_lea.vmem [#allocation6], 20
        %v576 = vld [vmem:[%s575] sm:$0xf]
        %v579 = vunpack.c.l.b16 %v572
        %v580 = vunpack.c.l.b16 %v573
        %v581 = vpack.c.b16 %v580, %v579
        %582 = vrot.lane.b32.xlu0 %v581, 123
        %v583 = vpop.permute.xlu0 %582
        %v586 = vsel %vm294, %v576, 0
        %588 = vmatprep.subr.bf16.mxu0 0
        %589 = vmatpush1.bf16.msra.mxu0 0
        %590 = vmatprep.subr.bf16.mxu0 0
        %591 = vmatpush1.bf16.msra.mxu0 0
        %592 = vmatprep.subr.bf16.mxu0 0
        %593 = vmatpush1.bf16.msra.mxu0 0
        %594 = vmatprep.subr.bf16.mxu0 0
        %595 = vmatpush1.bf16.msra.mxu0 0
        %596 = vmatprep.subr.bf16.mxu0 0
        %597 = vmatpush1.bf16.msra.mxu0 0
        %598 = vmatprep.subr.bf16.mxu0 0
        %599 = vmatpush1.bf16.msra.mxu0 0
        %600 = vmatprep.subr.bf16.mxu0 0
        %601 = vmatpush1.bf16.msra.mxu0 0
        %602 = vmatprep.subr.bf16.mxu0 0
        %603 = vmatpush1.bf16.msra.mxu0 %v583
        %604 = vmatprep.subr.bf16.mxu0 0
        %605 = vmatpush2.bf16.msra.mxu0 0
        %606 = vmatprep.subr.bf16.mxu0 0
        %607 = vmatpush2.bf16.msra.mxu0 0
        %608 = vmatprep.subr.bf16.mxu0 0
        %609 = vmatpush2.bf16.msra.mxu0 0
        %610 = vmatprep.subr.bf16.mxu0 0
        %611 = vmatpush2.bf16.msra.mxu0 0
        %612 = vmatprep.subr.bf16.mxu0 0
        %613 = vmatpush2.bf16.msra.mxu0 0
        %614 = vmatprep.subr.bf16.mxu0 0
        %615 = vmatpush2.bf16.msra.mxu0 0
        %616 = vmatprep.subr.bf16.mxu0 0
        %617 = vmatpush2.bf16.msra.mxu0 0
        %618 = vmatprep.subr.bf16.mxu0 0
        %619 = vmatpush2.bf16.msra.mxu0 0
        %620 = vmatprep.mubr.bf16.mxu0 0
        %621 = vmatmul.mubr.bf16.gmra.mxu0 %v586
        %v622 = vpop.f32.mrf.mxu0
        %v623 = vadd.f32 0.0, %v622
        %v624 = vpop.f32.mrf.mxu0
        %v625 = vpop.f32.mrf.mxu0
        %v626 = vpop.f32.mrf.mxu0
        %627 = vdwg.mxu0
        %v628 = vadd.f32 %v574, %v623
        %629 = vst.msk [vmem:[#allocation2] sm:$0xff] %vm294, %v628
        %v630 = vld [vmem:[%s234] sm:$0xf]
        %v631 = vld [vmem:[%s234 + $0x4] sm:$0xf]
        %v632 = vld [vmem:[#allocation2] sm:$0xff]
        %s633 = scalar_lea.vmem [#allocation6], 24
        %v634 = vld [vmem:[%s633] sm:$0xf]
        %v637 = vunpack.c.l.b16 %v630
        %v638 = vunpack.c.l.b16 %v631
        %v639 = vpack.c.b16 %v638, %v637
        %640 = vrot.lane.b32.xlu0 %v639, 122
        %v641 = vpop.permute.xlu0 %640
        %v644 = vsel %vm294, %v634, 0
        %646 = vmatprep.subr.bf16.mxu0 0
        %647 = vmatpush1.bf16.msra.mxu0 0
        %648 = vmatprep.subr.bf16.mxu0 0
        %649 = vmatpush1.bf16.msra.mxu0 0
        %650 = vmatprep.subr.bf16.mxu0 0
        %651 = vmatpush1.bf16.msra.mxu0 0
        %652 = vmatprep.subr.bf16.mxu0 0
        %653 = vmatpush1.bf16.msra.mxu0 0
        %654 = vmatprep.subr.bf16.mxu0 0
        %655 = vmatpush1.bf16.msra.mxu0 0
        %656 = vmatprep.subr.bf16.mxu0 0
        %657 = vmatpush1.bf16.msra.mxu0 0
        %658 = vmatprep.subr.bf16.mxu0 0
        %659 = vmatpush1.bf16.msra.mxu0 0
        %660 = vmatprep.subr.bf16.mxu0 0
        %661 = vmatpush1.bf16.msra.mxu0 %v641
        %662 = vmatprep.subr.bf16.mxu0 0
        %663 = vmatpush2.bf16.msra.mxu0 0
        %664 = vmatprep.subr.bf16.mxu0 0
        %665 = vmatpush2.bf16.msra.mxu0 0
        %666 = vmatprep.subr.bf16.mxu0 0
        %667 = vmatpush2.bf16.msra.mxu0 0
        %668 = vmatprep.subr.bf16.mxu0 0
        %669 = vmatpush2.bf16.msra.mxu0 0
        %670 = vmatprep.subr.bf16.mxu0 0
        %671 = vmatpush2.bf16.msra.mxu0 0
        %672 = vmatprep.subr.bf16.mxu0 0
        %673 = vmatpush2.bf16.msra.mxu0 0
        %674 = vmatprep.subr.bf16.mxu0 0
        %675 = vmatpush2.bf16.msra.mxu0 0
        %676 = vmatprep.subr.bf16.mxu0 0
        %677 = vmatpush2.bf16.msra.mxu0 0
        %678 = vmatprep.mubr.bf16.mxu0 0
        %679 = vmatmul.mubr.bf16.gmra.mxu0 %v644
        %v680 = vpop.f32.mrf.mxu0
        %v681 = vadd.f32 0.0, %v680
        %v682 = vpop.f32.mrf.mxu0
        %v683 = vpop.f32.mrf.mxu0
        %v684 = vpop.f32.mrf.mxu0
        %685 = vdwg.mxu0
        %v686 = vadd.f32 %v632, %v681
        %687 = vst.msk [vmem:[#allocation2] sm:$0xff] %vm294, %v686
        // Predicated region
        $region45: #{tpu_custom_call.1} parent=31 // pred_check
          %p688 = pneg %p271
        $region46: #{tpu_custom_call.1} parent=31 // pred_check_branch
          %690 = sbr.rel (%p688) target = $region48
        $region47: #{tpu_custom_call.1} parent=31 // pred_region
          %v691 = vld [vmem:[#allocation2] sm:$0xff]
          %vm692 = vcmp.ge.f32.partialorder %v691, 0.0
          %v693 = vmul.f32 %v691, 0.2
          %v694 = vsel %vm692, %v691, %v693
          %695 = vst.msk [vmem:[%s264] sm:$0xff] %vm294, %v694
        $region48: #{tpu_custom_call.1} parent=31 // pred_fallthru
          _
        %s696 = sand.u32 %s143, 1
        %s697 = scalar_lea.sflag [#allocation5], %s696
        %s698 = sand.u32 %s143, 1
        %s699 = smul.addr %s698, 8
        %s700 = scalar_lea.vmem [#allocation8], %s699
        // Predicated region
        $region49: #{tpu_custom_call.1} parent=31 // pred_check
          %p701 = pneg %p153
        $region50: #{tpu_custom_call.1} parent=31 // pred_check_branch
          %703 = sbr.rel (%p701) target = $region52
        $region51: #{tpu_custom_call.1} parent=31 // pred_region
          %s705 = ssub.s32 128, 128
          %706 = vsyncadd %s697, %s705
          %s707 = sadd.s32 %s29, %s27
          %s708 = sadd.s32 %s707, %s28
          %s709 = smul.addr %s708, 128
          %s710 = scalar_lea.hbm %s3, %s709
          %s712 = sshll.u32 %s700, 4
          %s713 = int_to_ptr.vmem [resolvable:$true] %s712
          %715 = dma.vmem_to_hbm [thread:$0]  %s713, 128, %s710, %s697
        $region52: #{tpu_custom_call.1} parent=31 // pred_fallthru
          _
      $region32: #{tpu_custom_call.1} parent=5 // pred_fallthru
        _
      %p716 = scmp.le.s32.totalorder 2, %s16
      // Predicated region
      $region53: #{tpu_custom_call.1} parent=5 // pred_check
        %p717 = pneg %p716
      $region54: #{tpu_custom_call.1} parent=5 // pred_check_branch
        %719 = sbr.rel (%p717) target = $region56
      $region55: #{tpu_custom_call.1} parent=5 // pred_region
        %s720 = ssub.s32 %s16, 2
        // Predicated region
        $region57: #{tpu_custom_call.1} parent=55 // pred_check
          %p721 = pneg %p159
        $region58: #{tpu_custom_call.1} parent=55 // pred_check_branch
          %723 = sbr.rel (%p721) target = $region60
        $region59: #{tpu_custom_call.1} parent=55 // pred_region
          %s724 = sand.u32 %s144, 1
          %s725 = scalar_lea.sflag [#allocation5], %s724
          %s726 = sand.u32 %s144, 1
          %s727 = smul.addr %s726, 8
          %s728 = scalar_lea.vmem [#allocation8], %s727
          %729 = dma.done %s725, 128
        $region60: #{tpu_custom_call.1} parent=55 // pred_fallthru
          _
      $region56: #{tpu_custom_call.1} parent=5 // pred_fallthru
        _
    $region6: #{tpu_custom_call.1} parent=1 // loop_footer
      %s20 = sadd.s32 1, %s16
    $region7: #{tpu_custom_call.1} parent=1 // loop_footer_branch
      %15 = sbr.rel target = $region3
    $region8: #{tpu_custom_call.1} parent=1 // loop_exit
      _
    %730 = vsyncpa [#allocation4], 1
    %s731 = scalar_lea.sflag [#allocation4], 1
    %732 = vsyncpa %s731, 1
    %733 = vsyncpa [#allocation7], 1
    %734 = vsyncpa [#allocation5], 1
    %s735 = scalar_lea.sflag [#allocation5], 1
    %736 = vsyncpa %s735, 1

</llo_original>
